<compile_context>
chip_gen: v6e
topology: v6e:2x2x1
jax: 0.10.0
libtpu: 0.0.40
codegen_flags: <defaults>
</compile_context>

<pallas_src>
import functools
import math

import jax
import jax.numpy as jnp
import numpy as np
from jax.experimental import pallas as pl
from jax.experimental.pallas import tpu as pltpu

# ------------------------------ hyper-params -----------------------------------
B, S = 2, 8          # batch, sequence length  (flattened to 16 rows)
D_IN = 32            # d_in  (d_model)
D_HID = 64           # d_hid (FFN hidden)
LN_EPS = 1e-6        # eps of the module's nn.LayerNorm

_LANE = 128          # TPU lane width (last-dim tiling unit)
_SUBLANE = 8         # TPU sublane count (second-to-last-dim tiling unit)


def _round_up(x, m):
    return (x + m - 1) // m * m


# ------------------------------- Pallas kernel ---------------------------------
def _ffn_kernel(x_ref, w1_ref, b1_ref, w2_ref, b2_ref, g_ref, beta_ref, out_ref,
                *, d_valid, eps):
    """One row tile: h = relu(x@w1+b1); y = h@w2+b2 + x; out = LayerNorm(y).

    Feature dims are lane-padded to multiples of 128; padded lanes of y are
    exactly zero by construction, and LN statistics use only the first
    `d_valid` lanes.
    """
    x = x_ref[...]                                              # (TM, Dp_in) f32

    # --- FFN: bf16 operands on the MXU, f32 accumulation ----------------------
    h = jnp.dot(x.astype(jnp.bfloat16), w1_ref[...],
                preferred_element_type=jnp.float32) + b1_ref[...]
    h = jnp.maximum(h, 0.0)                                     # ReLU
    y = jnp.dot(h.astype(jnp.bfloat16), w2_ref[...],
                preferred_element_type=jnp.float32) + b2_ref[...]

    # --- residual add (f32) ----------------------------------------------------
    y = y + x                                                   # padded lanes stay 0

    # --- LayerNorm over the d_valid real features (f32, eps inside rsqrt) ------
    lane = jax.lax.broadcasted_iota(jnp.int32, y.shape, dimension=1)
    valid = lane < d_valid
    mu = jnp.sum(y, axis=-1, keepdims=True) * (1.0 / d_valid)   # padded lanes are 0
    centered = jnp.where(valid, y - mu, 0.0)
    var = jnp.sum(centered * centered, axis=-1, keepdims=True) * (1.0 / d_valid)
    inv = jax.lax.rsqrt(var + eps)
    out_ref[...] = (centered * inv * g_ref[...] + beta_ref[...]).astype(out_ref.dtype)


# --------------------------------- wrapper --------------------------------------
def positionwise_feed_forward(x, params, *, block_m=None):
    """Fused forward of PositionwiseFeedForward.  x: (..., d_in)."""
    w1, b1, w2, b2, gamma, beta = params
    d_in = x.shape[-1]
    d_hid = w1.shape[-1]
    lead = x.shape[:-1]
    n = int(np.prod(lead)) if lead else 1

    # ---- lane-dense feature padding (multiples of 128) -------------------------
    dp_in = _round_up(d_in, _LANE)
    dp_hid = _round_up(d_hid, _LANE)
    pad_in = dp_in - d_in
    pad_hid = dp_hid - d_hid

    x2 = jnp.pad(x.reshape(n, d_in).astype(jnp.float32), ((0, 0), (0, pad_in)))
    w1p = jnp.pad(w1, ((0, pad_in), (0, pad_hid))).astype(jnp.bfloat16)
    b1p = jnp.pad(b1, ((0, 0), (0, pad_hid))).astype(jnp.float32)
    w2p = jnp.pad(w2, ((0, pad_hid), (0, pad_in))).astype(jnp.bfloat16)
    b2p = jnp.pad(b2, ((0, 0), (0, pad_in))).astype(jnp.float32)
    gp = jnp.pad(gamma, ((0, 0), (0, pad_in))).astype(jnp.float32)
    betp = jnp.pad(beta, ((0, 0), (0, pad_in))).astype(jnp.float32)

    # ---- row tiling: sublane-aligned, >= 2 grid steps when there is work -------
    if block_m is None:
        block_m = max(_SUBLANE, min(256, _round_up(-(-n // 2), _SUBLANE)))
    block_m = _round_up(block_m, _SUBLANE)
    n_pad = _round_up(max(n, 1), block_m)
    if n_pad > n:
        x2 = jnp.pad(x2, ((0, n_pad - n), (0, 0)))
    grid = (n_pad // block_m,)

    kernel = functools.partial(_ffn_kernel, d_valid=d_in, eps=LN_EPS)

    def _const_spec(shape):
        # Constant index map -> never re-fetched -> single buffer (saves VMEM).
        return pl.BlockSpec(shape, lambda i: (0, 0), pipeline_mode=pl.Buffered(1))

    out2 = pl.pallas_call(
        kernel,
        out_shape=jax.ShapeDtypeStruct((n_pad, dp_in), x.dtype),
        grid=grid,
        in_specs=[
            pl.BlockSpec((block_m, dp_in), lambda i: (i, 0)),   # activations (row tile)
            _const_spec(w1p.shape),                             # w_1   (Dp_in, Dp_hid) bf16
            _const_spec(b1p.shape),                             # b_1   (1, Dp_hid)     f32
            _const_spec(w2p.shape),                             # w_2   (Dp_hid, Dp_in) bf16
            _const_spec(b2p.shape),                             # b_2   (1, Dp_in)      f32
            _const_spec(gp.shape),                              # LN gamma (1, Dp_in)   f32
            _const_spec(betp.shape),                            # LN beta  (1, Dp_in)   f32
        ],
        out_specs=pl.BlockSpec((block_m, dp_in), lambda i: (i, 0)),
        compiler_params=pltpu.CompilerParams(
            dimension_semantics=("parallel",),
            vmem_limit_bytes=64 * 1024 * 1024,
        ),
    )(x2, w1p, b1p, w2p, b2p, gp, betp)

    return out2[:n, :d_in].reshape(*lead, d_in)


# ------------------------- deterministic parameter init -------------------------
def init_params(key):
    k1, k2, k3, k4 = jax.random.split(key, 4)

    def lin(k, fan_in, fan_out):
        return jax.random.normal(k, (fan_in, fan_out), jnp.float32) / math.sqrt(fan_in)

    w1 = lin(k1, D_IN, D_HID)
    b1 = 0.01 * jax.random.normal(k2, (1, D_HID), jnp.float32)
    w2 = lin(k3, D_HID, D_IN)
    b2 = 0.01 * jax.random.normal(k4, (1, D_IN), jnp.float32)
    gamma = jnp.ones((1, D_IN), jnp.float32)
    beta = jnp.zeros((1, D_IN), jnp.float32)
    return [w1, b1, w2, b2, gamma, beta]


# ------------------------------ pure-JAX reference -------------------------------
def _ref_forward(x, params, *, matmul_dtype=jnp.float32):
    """Module semantics; matmul_dtype=bf16 mirrors the kernel's MXU precision."""
    w1, b1, w2, b2, gamma, beta = params
    residual = x
    h = jnp.dot(x.astype(matmul_dtype), w1.astype(matmul_dtype),
                preferred_element_type=jnp.float32) + b1
    h = jnp.maximum(h, 0.0)
    y = jnp.dot(h.astype(matmul_dtype), w2.astype(matmul_dtype),
                preferred_element_type=jnp.float32) + b2
    y = y + residual
    mu = jnp.mean(y, axis=-1, keepdims=True)
    var = jnp.mean((y - mu) ** 2, axis=-1, keepdims=True)
    return (y - mu) * jax.lax.rsqrt(var + LN_EPS) * gamma + beta


# ------------------------------------ main ---------------------------------------
if __name__ == "__main__":
    key = jax.random.PRNGKey(0)
    k_x, k_p = jax.random.split(key)

    x = jax.random.normal(k_x, (B, S, D_IN), jnp.float32)
    params = init_params(k_p)

    out = positionwise_feed_forward(x, params)
    out = jax.block_until_ready(out)
    assert out.shape == (B, S, D_IN)

    # Tight check vs a reference using the same MXU precision (bf16 ops, f32 acc).
    ref_match = jax.block_until_ready(_ref_forward(x, params, matmul_dtype=jnp.bfloat16))
    np.testing.assert_allclose(np.asarray(out), np.asarray(ref_match),
                               rtol=1e-4, atol=1e-4)

    # Looser check vs the pure-f32 module semantics (bf16 MXU rounding only).
    ref_f32 = jax.block_until_ready(_ref_forward(x, params, matmul_dtype=jnp.float32))
    np.testing.assert_allclose(np.asarray(out), np.asarray(ref_f32),
                               rtol=2e-2, atol=2e-2)

    print("KERNEL_OK")
</pallas_src>

<mosaic_0001>
module attributes {stable_mosaic.version = 11 : i64} {
  func.func @_ffn_kernel(%arg0: i32, %arg1: memref<8x128xf32, #tpu.memory_space<vmem>>, %arg2: memref<128x128xbf16, #tpu.memory_space<vmem>>, %arg3: memref<1x128xf32, #tpu.memory_space<vmem>>, %arg4: memref<128x128xbf16, #tpu.memory_space<vmem>>, %arg5: memref<1x128xf32, #tpu.memory_space<vmem>>, %arg6: memref<1x128xf32, #tpu.memory_space<vmem>>, %arg7: memref<1x128xf32, #tpu.memory_space<vmem>>, %arg8: memref<8x128xf32, #tpu.memory_space<vmem>>) attributes {dimension_semantics = [#tpu.dimension_semantics<parallel>], iteration_bounds = array<i64: 2>, scalar_prefetch = 0 : i64, scratch_operands = 0 : i64, tpu.core_type = #tpu.core_type<tc>, window_params = [{transform_indices = @transform_0, window_bounds = array<i64: 8, 128>}, {pipeline_mode = #tpu.pipeline_mode<synchronous>, transform_indices = @transform_1, window_bounds = array<i64: 128, 128>}, {pipeline_mode = #tpu.pipeline_mode<synchronous>, transform_indices = @transform_2, window_bounds = array<i64: 1, 128>}, {pipeline_mode = #tpu.pipeline_mode<synchronous>, transform_indices = @transform_3, window_bounds = array<i64: 128, 128>}, {pipeline_mode = #tpu.pipeline_mode<synchronous>, transform_indices = @transform_4, window_bounds = array<i64: 1, 128>}, {pipeline_mode = #tpu.pipeline_mode<synchronous>, transform_indices = @transform_5, window_bounds = array<i64: 1, 128>}, {pipeline_mode = #tpu.pipeline_mode<synchronous>, transform_indices = @transform_6, window_bounds = array<i64: 1, 128>}, {transform_indices = @transform_7, window_bounds = array<i64: 8, 128>}]} {
    %c0 = arith.constant 0 : index
    %c0_0 = arith.constant 0 : index
    %0 = vector.load %arg1[%c0, %c0_0] : memref<8x128xf32, #tpu.memory_space<vmem>>, vector<8x128xf32>
    %1 = arith.truncf %0 : vector<8x128xf32> to vector<8x128xbf16>
    %c0_1 = arith.constant 0 : index
    %c0_2 = arith.constant 0 : index
    %2 = vector.load %arg2[%c0_1, %c0_2] : memref<128x128xbf16, #tpu.memory_space<vmem>>, vector<128x128xbf16>
    %cst = arith.constant dense<0.000000e+00> : vector<8x128xf32>
    %3 = tpu.matmul %1, %2, %cst {dimension_numbers = #tpu.dot_dimension_numbers<[1], [0], [0], [1], [0, 0, 1, 1], [], []>} : vector<8x128xbf16>, vector<128x128xbf16>, vector<8x128xf32> -> vector<8x128xf32>
    %c0_3 = arith.constant 0 : index
    %c0_4 = arith.constant 0 : index
    %4 = vector.load %arg3[%c0_3, %c0_4] : memref<1x128xf32, #tpu.memory_space<vmem>>, vector<1x128xf32>
    %5 = vector.broadcast %4 : vector<1x128xf32> to vector<8x128xf32>
    %6 = arith.addf %3, %5 : vector<8x128xf32>
    %cst_5 = arith.constant 0.000000e+00 : f32
    %7 = vector.broadcast %cst_5 : f32 to vector<8x128xf32>
    %8 = arith.maximumf %6, %7 : vector<8x128xf32>
    %9 = arith.truncf %8 : vector<8x128xf32> to vector<8x128xbf16>
    %c0_6 = arith.constant 0 : index
    %c0_7 = arith.constant 0 : index
    %10 = vector.load %arg4[%c0_6, %c0_7] : memref<128x128xbf16, #tpu.memory_space<vmem>>, vector<128x128xbf16>
    %cst_8 = arith.constant dense<0.000000e+00> : vector<8x128xf32>
    %11 = tpu.matmul %9, %10, %cst_8 {dimension_numbers = #tpu.dot_dimension_numbers<[1], [0], [0], [1], [0, 0, 1, 1], [], []>} : vector<8x128xbf16>, vector<128x128xbf16>, vector<8x128xf32> -> vector<8x128xf32>
    %c0_9 = arith.constant 0 : index
    %c0_10 = arith.constant 0 : index
    %12 = vector.load %arg5[%c0_9, %c0_10] : memref<1x128xf32, #tpu.memory_space<vmem>>, vector<1x128xf32>
    %13 = vector.broadcast %12 : vector<1x128xf32> to vector<8x128xf32>
    %14 = arith.addf %11, %13 : vector<8x128xf32>
    %15 = arith.addf %14, %0 : vector<8x128xf32>
    %16 = tpu.iota {dimensions = array<i32: 1>} : vector<8x128xi32>
    %c32_i32 = arith.constant 32 : i32
    %17 = vector.broadcast %c32_i32 : i32 to vector<8x128xi32>
    %18 = arith.cmpi slt, %16, %17 : vector<8x128xi32>
    %cst_11 = arith.constant dense<0.000000e+00> : vector<8xf32>
    %19 = vector.multi_reduction <add>, %15, %cst_11 [1] : vector<8x128xf32> to vector<8xf32>
    %20 = vector.shape_cast %19 : vector<8xf32> to vector<8x1xf32>
    %cst_12 = arith.constant 3.125000e-02 : f32
    %21 = vector.broadcast %cst_12 : f32 to vector<8x1xf32>
    %22 = arith.mulf %20, %21 : vector<8x1xf32>
    %23 = vector.broadcast %22 : vector<8x1xf32> to vector<8x128xf32>
    %24 = arith.subf %15, %23 : vector<8x128xf32>
    %cst_13 = arith.constant 0.000000e+00 : f32
    %25 = vector.broadcast %cst_13 : f32 to vector<8x128xf32>
    %26 = arith.select %18, %24, %25 : vector<8x128xi1>, vector<8x128xf32>
    %27 = arith.mulf %26, %26 : vector<8x128xf32>
    %cst_14 = arith.constant dense<0.000000e+00> : vector<8xf32>
    %28 = vector.multi_reduction <add>, %27, %cst_14 [1] : vector<8x128xf32> to vector<8xf32>
    %29 = vector.shape_cast %28 : vector<8xf32> to vector<8x1xf32>
    %cst_15 = arith.constant 3.125000e-02 : f32
    %30 = vector.broadcast %cst_15 : f32 to vector<8x1xf32>
    %31 = arith.mulf %29, %30 : vector<8x1xf32>
    %cst_16 = arith.constant 9.99999997E-7 : f32
    %32 = vector.broadcast %cst_16 : f32 to vector<8x1xf32>
    %33 = arith.addf %31, %32 : vector<8x1xf32>
    %34 = math.rsqrt %33 : vector<8x1xf32>
    %35 = vector.broadcast %34 : vector<8x1xf32> to vector<8x128xf32>
    %36 = arith.mulf %26, %35 : vector<8x128xf32>
    %c0_17 = arith.constant 0 : index
    %c0_18 = arith.constant 0 : index
    %37 = vector.load %arg6[%c0_17, %c0_18] : memref<1x128xf32, #tpu.memory_space<vmem>>, vector<1x128xf32>
    %38 = vector.broadcast %37 : vector<1x128xf32> to vector<8x128xf32>
    %39 = arith.mulf %36, %38 : vector<8x128xf32>
    %c0_19 = arith.constant 0 : index
    %c0_20 = arith.constant 0 : index
    %40 = vector.load %arg7[%c0_19, %c0_20] : memref<1x128xf32, #tpu.memory_space<vmem>>, vector<1x128xf32>
    %41 = vector.broadcast %40 : vector<1x128xf32> to vector<8x128xf32>
    %42 = arith.addf %39, %41 : vector<8x128xf32>
    %c0_21 = arith.constant 0 : index
    %c0_22 = arith.constant 0 : index
    %43 = vector.load %arg8[%c0_21, %c0_22] : memref<8x128xf32, #tpu.memory_space<vmem>>, vector<8x128xf32>
    tpu.vector_store %arg8[%c0_21, %c0_22], %42 {strides = array<i32>} : memref<8x128xf32, #tpu.memory_space<vmem>>, vector<8x128xf32>,
    return
  }
  func.func @transform_0(%arg0: i32) -> (i32, i32) {
    %c0_i32 = arith.constant 0 : i32
    %c0_i32_0 = arith.constant 0 : i32
    return %arg0, %c0_i32 : i32, i32
  }
  func.func @transform_1(%arg0: i32) -> (i32, i32) {
    %c0_i32 = arith.constant 0 : i32
    %c0_i32_0 = arith.constant 0 : i32
    %c0_i32_1 = arith.constant 0 : i32
    return %c0_i32, %c0_i32_0 : i32, i32
  }
  func.func @transform_2(%arg0: i32) -> (i32, i32) {
    %c0_i32 = arith.constant 0 : i32
    %c0_i32_0 = arith.constant 0 : i32
    %c0_i32_1 = arith.constant 0 : i32
    return %c0_i32, %c0_i32_0 : i32, i32
  }
  func.func @transform_3(%arg0: i32) -> (i32, i32) {
    %c0_i32 = arith.constant 0 : i32
    %c0_i32_0 = arith.constant 0 : i32
    %c0_i32_1 = arith.constant 0 : i32
    return %c0_i32, %c0_i32_0 : i32, i32
  }
  func.func @transform_4(%arg0: i32) -> (i32, i32) {
    %c0_i32 = arith.constant 0 : i32
    %c0_i32_0 = arith.constant 0 : i32
    %c0_i32_1 = arith.constant 0 : i32
    return %c0_i32, %c0_i32_0 : i32, i32
  }
  func.func @transform_5(%arg0: i32) -> (i32, i32) {
    %c0_i32 = arith.constant 0 : i32
    %c0_i32_0 = arith.constant 0 : i32
    %c0_i32_1 = arith.constant 0 : i32
    return %c0_i32, %c0_i32_0 : i32, i32
  }
  func.func @transform_6(%arg0: i32) -> (i32, i32) {
    %c0_i32 = arith.constant 0 : i32
    %c0_i32_0 = arith.constant 0 : i32
    %c0_i32_1 = arith.constant 0 : i32
    return %c0_i32, %c0_i32_0 : i32, i32
  }
  func.func @transform_7(%arg0: i32) -> (i32, i32) {
    %c0_i32 = arith.constant 0 : i32
    %c0_i32_0 = arith.constant 0 : i32
    return %arg0, %c0_i32 : i32, i32
  }
}

</mosaic_0001>

<llo_original>
// kernel: tpu_custom_call.1
$region0: #{tpu_custom_call.1}
  #allocation0 [shape = 'u32[]', space=smem, size = 0x4, offset = 0x4, fixed_abs, tag = 'smem constant byte address 0x4 - core index']
  #allocation1 [shape = 'u32[144,128]{1,0:T(1,128)}', space=vmem, size = 0x12000, scoped, tag = 'internal scratch']
  %s0 = inlined_call_operand.hbm [shape: f32[16,128], index: 0, kind: input, shape index: {}]
  %s1 = inlined_call_operand.hbm [shape: bf16[128,128], index: 1, kind: input, shape index: {}]
  %s2 = inlined_call_operand.vmem [shape: f32[1,128], index: 2, kind: input, shape index: {}]
  %s3 = inlined_call_operand.hbm [shape: bf16[128,128], index: 3, kind: input, shape index: {}]
  %s4 = inlined_call_operand.vmem [shape: f32[1,128], index: 4, kind: input, shape index: {}]
  %s5 = inlined_call_operand.vmem [shape: f32[1,128], index: 5, kind: input, shape index: {}]
  %s6 = inlined_call_operand.vmem [shape: f32[1,128], index: 6, kind: input, shape index: {}]
  %s7 = inlined_call_operand.hbm [shape: f32[16,128], index: 7, kind: output, shape index: {}]
  %s8 = sld [smem:[#allocation0]]
  $region73: #{tpu_custom_call.1} parent=0
    _
  %s10 = ssub.s32 1, %s8
  %s11 = scalar_select 0, %s10, %s8
  $region1: #{tpu_custom_call.1} parent=0
    #allocation2 [shape = 'u8[8192]{0}', space=vmem, size = 0x2000, scoped, tag = 'input window, operand 0']
    #allocation3 [shape = 's32[2]{0}', space=sflag, size = 0x8, scoped, tag = 'scoped memory for tpu_custom_call.1']
    #allocation4 [shape = 's32[2]{0}', space=sflag, size = 0x8, scoped, tag = 'scoped memory for tpu_custom_call.1']
    #allocation5 [shape = 'u8[32768]{0}', space=vmem, size = 0x8000, scoped, tag = 'input window, operand 1, single buffered']
    #allocation6 [shape = 's32[1]{0}', space=sflag, size = 0x4, scoped, tag = 'scoped memory for tpu_custom_call.1']
    #allocation7 [shape = 'u8[32768]{0}', space=vmem, size = 0x8000, scoped, tag = 'input window, operand 3, single buffered']
    #allocation8 [shape = 'u8[8192]{0}', space=vmem, size = 0x2000, scoped, tag = 'output window, operand 0']
    %12 = vsyncpa [#allocation3], 0
    %s13 = scalar_lea.sflag [#allocation3], 1
    %14 = vsyncpa %s13, 0
    %15 = vsyncpa [#allocation6], 0
    %16 = vsyncpa [#allocation4], 0
    %s17 = scalar_lea.sflag [#allocation4], 1
    %18 = vsyncpa %s17, 0
    loop: start=0, step=1, limit=4
    $region2: #{tpu_custom_call.1} parent=1 // loop_pre_header
      _
    $region3: #{tpu_custom_call.1} parent=1 // loop_header
      %s20 = sphi 0, %s24
      %p21 = scmp.ge.s32.totalorder %s20, 4
      %s30 = sphi 0, %s32
      %s33 = sphi 0, %s30
      %s34 = sphi 0, %s33
      %s50 = sphi 0, %s34
      %s54 = sphi 0, %s54
      %s56 = sphi 0, %s54
      %s57 = sphi 0, %s56
      %s71 = sphi 0, %s57
      %s75 = sphi 0, %s75
      %s77 = sphi 0, %s75
      %s78 = sphi 0, %s77
      %s92 = sphi 0, %s78
      %s96 = sphi 0, %s96
      %s98 = sphi 0, %s96
      %s99 = sphi 0, %s98
      %s113 = sphi 0, %s99
      %s117 = sphi 0, %s117
      %s119 = sphi 0, %s117
      %s120 = sphi 0, %s119
      %s134 = sphi 0, %s120
      %s138 = sphi 0, %s138
      %s140 = sphi 0, %s138
      %s141 = sphi 0, %s140
      %s155 = sphi 0, %s141
      %s159 = sphi 0, %s159
      %s161 = sphi 0, %s159
      %s162 = sphi 0, %s161
      %s176 = sphi 0, %s162
      %s182 = sphi 0, %s184
      %s185 = sphi 0, %s182
      %s186 = sphi 0, %s185
      %s202 = sphi 0, %s186
    $region4: #{tpu_custom_call.1} parent=1 // loop_header_branch
      %23 = sbr.rel (%p21) target = $region8
    $region5: #{tpu_custom_call.1} parent=1 // loop_body
      %s25 = ssub.s32 %s20, 1
      %s26 = ssub.s32 %s20, 2
      %s27 = sadd.s32 %s20, 1
      %s28 = ssub.s32 %s20, %s27
      %p29 = scmp.eq.s32.totalorder %s28, 0
      %s31 = sadd.s32 %s30, 1
      %s32 = scalar_select %p29, %s30, %s31
      %p35 = pneg %p29
      %p36 = scmp.eq.s32.totalorder %s20, 1
      %p37 = por %p35, %p36
      %p38 = scmp.ne.s32.totalorder %s30, %s33
      %p39 = scmp.eq.s32.totalorder %s20, 0
      %p40 = por %p38, %p39
      %p41 = scmp.ne.s32.totalorder %s30, %s33
      %p42 = scmp.eq.s32.totalorder %s25, 1
      %p43 = por %p41, %p42
      %p44 = scmp.ne.s32.totalorder %s33, %s34
      %p45 = scmp.eq.s32.totalorder %s25, 0
      %p46 = por %p44, %p45
      %p47 = scmp.ne.s32.totalorder %s33, %s34
      %p48 = scmp.eq.s32.totalorder %s26, 1
      %p49 = por %p47, %p48
      %p51 = scmp.ne.s32.totalorder %s34, %s50
      %p52 = scmp.eq.s32.totalorder %s26, 0
      %p53 = por %p51, %p52
      %s55 = sadd.s32 %s54, 1
      %p58 = scmp.eq.s32.totalorder %s20, 1
      %p59 = scmp.ne.s32.totalorder %s54, %s56
      %p60 = scmp.eq.s32.totalorder %s20, 0
      %p61 = por %p59, %p60
      %p62 = scmp.ne.s32.totalorder %s54, %s56
      %p63 = scmp.eq.s32.totalorder %s25, 1
      %p64 = por %p62, %p63
      %p65 = scmp.ne.s32.totalorder %s56, %s57
      %p66 = scmp.eq.s32.totalorder %s25, 0
      %p67 = por %p65, %p66
      %p68 = scmp.ne.s32.totalorder %s56, %s57
      %p69 = scmp.eq.s32.totalorder %s26, 1
      %p70 = por %p68, %p69
      %p72 = scmp.ne.s32.totalorder %s57, %s71
      %p73 = scmp.eq.s32.totalorder %s26, 0
      %p74 = por %p72, %p73
      %s76 = sadd.s32 %s75, 1
      %p79 = scmp.eq.s32.totalorder %s20, 1
      %p80 = scmp.ne.s32.totalorder %s75, %s77
      %p81 = scmp.eq.s32.totalorder %s20, 0
      %p82 = por %p80, %p81
      %p83 = scmp.ne.s32.totalorder %s75, %s77
      %p84 = scmp.eq.s32.totalorder %s25, 1
      %p85 = por %p83, %p84
      %p86 = scmp.ne.s32.totalorder %s77, %s78
      %p87 = scmp.eq.s32.totalorder %s25, 0
      %p88 = por %p86, %p87
      %p89 = scmp.ne.s32.totalorder %s77, %s78
      %p90 = scmp.eq.s32.totalorder %s26, 1
      %p91 = por %p89, %p90
      %p93 = scmp.ne.s32.totalorder %s78, %s92
      %p94 = scmp.eq.s32.totalorder %s26, 0
      %p95 = por %p93, %p94
      %s97 = sadd.s32 %s96, 1
      %p100 = scmp.eq.s32.totalorder %s20, 1
      %p101 = scmp.ne.s32.totalorder %s96, %s98
      %p102 = scmp.eq.s32.totalorder %s20, 0
      %p103 = por %p101, %p102
      %p104 = scmp.ne.s32.totalorder %s96, %s98
      %p105 = scmp.eq.s32.totalorder %s25, 1
      %p106 = por %p104, %p105
      %p107 = scmp.ne.s32.totalorder %s98, %s99
      %p108 = scmp.eq.s32.totalorder %s25, 0
      %p109 = por %p107, %p108
      %p110 = scmp.ne.s32.totalorder %s98, %s99
      %p111 = scmp.eq.s32.totalorder %s26, 1
      %p112 = por %p110, %p111
      %p114 = scmp.ne.s32.totalorder %s99, %s113
      %p115 = scmp.eq.s32.totalorder %s26, 0
      %p116 = por %p114, %p115
      %s118 = sadd.s32 %s117, 1
      %p121 = scmp.eq.s32.totalorder %s20, 1
      %p122 = scmp.ne.s32.totalorder %s117, %s119
      %p123 = scmp.eq.s32.totalorder %s20, 0
      %p124 = por %p122, %p123
      %p125 = scmp.ne.s32.totalorder %s117, %s119
      %p126 = scmp.eq.s32.totalorder %s25, 1
      %p127 = por %p125, %p126
      %p128 = scmp.ne.s32.totalorder %s119, %s120
      %p129 = scmp.eq.s32.totalorder %s25, 0
      %p130 = por %p128, %p129
      %p131 = scmp.ne.s32.totalorder %s119, %s120
      %p132 = scmp.eq.s32.totalorder %s26, 1
      %p133 = por %p131, %p132
      %p135 = scmp.ne.s32.totalorder %s120, %s134
      %p136 = scmp.eq.s32.totalorder %s26, 0
      %p137 = por %p135, %p136
      %s139 = sadd.s32 %s138, 1
      %p142 = scmp.eq.s32.totalorder %s20, 1
      %p143 = scmp.ne.s32.totalorder %s138, %s140
      %p144 = scmp.eq.s32.totalorder %s20, 0
      %p145 = por %p143, %p144
      %p146 = scmp.ne.s32.totalorder %s138, %s140
      %p147 = scmp.eq.s32.totalorder %s25, 1
      %p148 = por %p146, %p147
      %p149 = scmp.ne.s32.totalorder %s140, %s141
      %p150 = scmp.eq.s32.totalorder %s25, 0
      %p151 = por %p149, %p150
      %p152 = scmp.ne.s32.totalorder %s140, %s141
      %p153 = scmp.eq.s32.totalorder %s26, 1
      %p154 = por %p152, %p153
      %p156 = scmp.ne.s32.totalorder %s141, %s155
      %p157 = scmp.eq.s32.totalorder %s26, 0
      %p158 = por %p156, %p157
      %s160 = sadd.s32 %s159, 1
      %p163 = scmp.eq.s32.totalorder %s20, 1
      %p164 = scmp.ne.s32.totalorder %s159, %s161
      %p165 = scmp.eq.s32.totalorder %s20, 0
      %p166 = por %p164, %p165
      %p167 = scmp.ne.s32.totalorder %s159, %s161
      %p168 = scmp.eq.s32.totalorder %s25, 1
      %p169 = por %p167, %p168
      %p170 = scmp.ne.s32.totalorder %s161, %s162
      %p171 = scmp.eq.s32.totalorder %s25, 0
      %p172 = por %p170, %p171
      %p173 = scmp.ne.s32.totalorder %s161, %s162
      %p174 = scmp.eq.s32.totalorder %s26, 1
      %p175 = por %p173, %p174
      %p177 = scmp.ne.s32.totalorder %s162, %s176
      %p178 = scmp.eq.s32.totalorder %s26, 0
      %p179 = por %p177, %p178
      %s180 = ssub.s32 %s20, %s27
      %p181 = scmp.eq.s32.totalorder %s180, 0
      %s183 = sadd.s32 %s182, 1
      %s184 = scalar_select %p181, %s182, %s183
      %p187 = pneg %p181
      %p188 = scmp.eq.s32.totalorder %s20, 1
      %p189 = por %p187, %p188
      %p190 = scmp.ne.s32.totalorder %s182, %s185
      %p191 = scmp.eq.s32.totalorder %s20, 0
      %p192 = por %p190, %p191
      %p193 = scmp.ne.s32.totalorder %s182, %s185
      %p194 = scmp.eq.s32.totalorder %s25, 1
      %p195 = por %p193, %p194
      %p196 = scmp.ne.s32.totalorder %s185, %s186
      %p197 = scmp.eq.s32.totalorder %s25, 0
      %p198 = por %p196, %p197
      %p199 = scmp.ne.s32.totalorder %s185, %s186
      %p200 = scmp.eq.s32.totalorder %s26, 1
      %p201 = por %p199, %p200
      %p203 = scmp.ne.s32.totalorder %s186, %s202
      %p204 = scmp.eq.s32.totalorder %s26, 0
      %p205 = por %p203, %p204
      %p206 = scmp.le.s32.totalorder 1, %s20
      %p207 = scmp.lt.s32.totalorder %s20, 3
      %p208 = pnand %p206, %p207
      %p209 = pneg %p208
      // Predicated region
      $region9: #{tpu_custom_call.1} parent=5 // pred_check
        _
      $region10: #{tpu_custom_call.1} parent=5 // pred_check_branch
        %211 = sbr.rel (%p208) target = $region12
      $region11: #{tpu_custom_call.1} parent=5 // pred_region
        %s212 = ssub.s32 %s20, 1
        // Predicated region
        $region13: #{tpu_custom_call.1} parent=11 // pred_check
          %p213 = pneg %p67
        $region14: #{tpu_custom_call.1} parent=11 // pred_check_branch
          %215 = sbr.rel (%p213) target = $region16
        $region15: #{tpu_custom_call.1} parent=11 // pred_region
          %s217 = ssub.s32 1024, 1024
          %218 = vsyncadd [#allocation6], %s217
          %s219 = sshll.u32 [#allocation5], 4
          %s220 = int_to_ptr.vmem [resolvable:$true] %s219
          %225 = dma.hbm_to_vmem [thread:$0]  %s1, 1024, %s220, [#allocation6], 64, 64, 4
        $region16: #{tpu_custom_call.1} parent=11 // pred_fallthru
          _
        // Predicated region
        $region17: #{tpu_custom_call.1} parent=11 // pred_check
          %p226 = pneg %p88
        $region18: #{tpu_custom_call.1} parent=11 // pred_check_branch
          %228 = sbr.rel (%p226) target = $region20
        $region19: #{tpu_custom_call.1} parent=11 // pred_region
          _
        $region20: #{tpu_custom_call.1} parent=11 // pred_fallthru
          _
        // Predicated region
        $region21: #{tpu_custom_call.1} parent=11 // pred_check
          %p229 = pneg %p109
        $region22: #{tpu_custom_call.1} parent=11 // pred_check_branch
          %231 = sbr.rel (%p229) target = $region24
        $region23: #{tpu_custom_call.1} parent=11 // pred_region
          %s233 = ssub.s32 1024, 1024
          %234 = vsyncadd [#allocation6], %s233
          %s235 = sshll.u32 [#allocation7], 4
          %s236 = int_to_ptr.vmem [resolvable:$true] %s235
          %241 = dma.hbm_to_vmem [thread:$0]  %s3, 1024, %s236, [#allocation6], 64, 64, 4
        $region24: #{tpu_custom_call.1} parent=11 // pred_fallthru
          _
        // Predicated region
        $region25: #{tpu_custom_call.1} parent=11 // pred_check
          %p242 = pneg %p130
        $region26: #{tpu_custom_call.1} parent=11 // pred_check_branch
          %244 = sbr.rel (%p242) target = $region28
        $region27: #{tpu_custom_call.1} parent=11 // pred_region
          _
        $region28: #{tpu_custom_call.1} parent=11 // pred_fallthru
          _
        // Predicated region
        $region29: #{tpu_custom_call.1} parent=11 // pred_check
          %p245 = pneg %p151
        $region30: #{tpu_custom_call.1} parent=11 // pred_check_branch
          %247 = sbr.rel (%p245) target = $region32
        $region31: #{tpu_custom_call.1} parent=11 // pred_region
          _
        $region32: #{tpu_custom_call.1} parent=11 // pred_fallthru
          _
        // Predicated region
        $region33: #{tpu_custom_call.1} parent=11 // pred_check
          %p248 = pneg %p172
        $region34: #{tpu_custom_call.1} parent=11 // pred_check_branch
          %250 = sbr.rel (%p248) target = $region36
        $region35: #{tpu_custom_call.1} parent=11 // pred_region
          _
        $region36: #{tpu_custom_call.1} parent=11 // pred_fallthru
          _
      $region12: #{tpu_custom_call.1} parent=5 // pred_fallthru
        _
      %p251 = scmp.lt.s32.totalorder %s20, 2
      // Predicated region
      $region37: #{tpu_custom_call.1} parent=5 // pred_check
        %p252 = pneg %p251
      $region38: #{tpu_custom_call.1} parent=5 // pred_check_branch
        %254 = sbr.rel (%p252) target = $region40
      $region39: #{tpu_custom_call.1} parent=5 // pred_region
        // Predicated region
        $region41: #{tpu_custom_call.1} parent=39 // pred_check
          %p255 = pneg %p40
        $region42: #{tpu_custom_call.1} parent=39 // pred_check_branch
          %257 = sbr.rel (%p255) target = $region44
        $region43: #{tpu_custom_call.1} parent=39 // pred_region
          %s258 = sand.u32 %s30, 1
          %s259 = scalar_lea.sflag [#allocation3], %s258
          %s260 = sand.u32 %s30, 1
          %s261 = smul.addr %s260, 8
          %s262 = scalar_lea.vmem [#allocation2], %s261
          %s264 = ssub.s32 128, 128
          %265 = vsyncadd %s259, %s264
          %s266 = smul.addr %s20, 128
          %s267 = scalar_lea.hbm %s0, %s266
          %s269 = sshll.u32 %s262, 4
          %s270 = int_to_ptr.vmem [resolvable:$true] %s269
          %272 = dma.hbm_to_vmem [thread:$0]  %s267, 128, %s270, %s259
        $region44: #{tpu_custom_call.1} parent=39 // pred_fallthru
          _
      $region40: #{tpu_custom_call.1} parent=5 // pred_fallthru
        _
      %p273 = scmp.le.s32.totalorder 1, %s20
      %p274 = scmp.lt.s32.totalorder %s20, 3
      %p275 = pnand %p273, %p274
      %p276 = pneg %p275
      // Predicated region
      $region45: #{tpu_custom_call.1} parent=5 // pred_check
        _
      $region46: #{tpu_custom_call.1} parent=5 // pred_check_branch
        %278 = sbr.rel (%p275) target = $region48
      $region47: #{tpu_custom_call.1} parent=5 // pred_region
        %s279 = ssub.s32 %s20, 1
        %s280 = sand.u32 %s33, 1
        %s281 = scalar_lea.sflag [#allocation3], %s280
        %s282 = sand.u32 %s33, 1
        %s283 = smul.addr %s282, 8
        %s284 = scalar_lea.vmem [#allocation2], %s283
        // Predicated region
        $region49: #{tpu_custom_call.1} parent=47 // pred_check
          %p285 = pneg %p46
        $region50: #{tpu_custom_call.1} parent=47 // pred_check_branch
          %287 = sbr.rel (%p285) target = $region52
        $region51: #{tpu_custom_call.1} parent=47 // pred_region
          %288 = dma.done %s281, 128
        $region52: #{tpu_custom_call.1} parent=47 // pred_fallthru
          _
        // Predicated region
        $region53: #{tpu_custom_call.1} parent=47 // pred_check
          %p289 = pneg %p67
        $region54: #{tpu_custom_call.1} parent=47 // pred_check_branch
          %291 = sbr.rel (%p289) target = $region56
        $region55: #{tpu_custom_call.1} parent=47 // pred_region
          %292 = dma.done [#allocation6], 1024
        $region56: #{tpu_custom_call.1} parent=47 // pred_fallthru
          _
        // Predicated region
        $region57: #{tpu_custom_call.1} parent=47 // pred_check
          %p293 = pneg %p109
        $region58: #{tpu_custom_call.1} parent=47 // pred_check_branch
          %295 = sbr.rel (%p293) target = $region60
        $region59: #{tpu_custom_call.1} parent=47 // pred_region
          %296 = dma.done [#allocation6], 1024
        $region60: #{tpu_custom_call.1} parent=47 // pred_fallthru
          _
        %s297 = sand.u32 %s33, 1
        %s298 = scalar_lea.sflag [#allocation3], %s297
        %s299 = sand.u32 %s33, 1
        %s300 = smul.addr %s299, 8
        %s301 = scalar_lea.vmem [#allocation2], %s300
        %p302 = pneg %p46
        %p303 = pneg %p43
        %p304 = pneg %p67
        %p305 = pneg %p64
        %p306 = pneg %p88
        %p307 = pneg %p85
        %p308 = pneg %p109
        %p309 = pneg %p106
        %p310 = pneg %p130
        %p311 = pneg %p127
        %p312 = pneg %p151
        %p313 = pneg %p148
        %p314 = pneg %p172
        %p315 = pneg %p169
        %p316 = pneg %p198
        %p317 = pneg %p195
        %s318 = sand.u32 %s185, 1
        %s319 = scalar_lea.sflag [#allocation4], %s318
        %s320 = sand.u32 %s185, 1
        %s321 = smul.addr %s320, 8
        %s322 = scalar_lea.vmem [#allocation8], %s321
        %v324 = vld [vmem:[%s284] sm:$0xff]
        %v325 = vpack.c.bf16 %v324, %v324
        %v326 = vld [vmem:[#allocation5] sm:$0xf]
        %v327 = vld [vmem:[#allocation5 + $0x4] sm:$0xf]
        %v328 = vld [vmem:[#allocation5 + $0x8] sm:$0xf]
        %v329 = vld [vmem:[#allocation5 + $0xc] sm:$0xf]
        %v330 = vld [vmem:[#allocation5 + $0x10] sm:$0xf]
        %v331 = vld [vmem:[#allocation5 + $0x14] sm:$0xf]
        %v332 = vld [vmem:[#allocation5 + $0x18] sm:$0xf]
        %v333 = vld [vmem:[#allocation5 + $0x1c] sm:$0xf]
        %v334 = vld [vmem:[#allocation5 + $0x20] sm:$0xf]
        %v335 = vld [vmem:[#allocation5 + $0x24] sm:$0xf]
        %v336 = vld [vmem:[#allocation5 + $0x28] sm:$0xf]
        %v337 = vld [vmem:[#allocation5 + $0x2c] sm:$0xf]
        %v338 = vld [vmem:[#allocation5 + $0x30] sm:$0xf]
        %v339 = vld [vmem:[#allocation5 + $0x34] sm:$0xf]
        %v340 = vld [vmem:[#allocation5 + $0x38] sm:$0xf]
        %v341 = vld [vmem:[#allocation5 + $0x3c] sm:$0xf]
        %v342 = vld [vmem:[%s2] sm:$0x1]
        %v344 = vlaneseq
        %v345 = vshrl.u32 %v344, 7
        %v346 = vsub.s32 0, %v345
        %v347 = vrot.slane %v342, %v346
        %v365 = vunpack.c.l.b16 %v326
        %v366 = vunpack.c.l.b16 %v327
        %v367 = vunpack.c.l.b16 %v328
        %v368 = vunpack.c.l.b16 %v329
        %v369 = vunpack.c.l.b16 %v330
        %v370 = vunpack.c.l.b16 %v331
        %v371 = vunpack.c.l.b16 %v332
        %v372 = vunpack.c.l.b16 %v333
        %v373 = vunpack.c.l.b16 %v334
        %v374 = vunpack.c.l.b16 %v335
        %v375 = vunpack.c.l.b16 %v336
        %v376 = vunpack.c.l.b16 %v337
        %v377 = vunpack.c.l.b16 %v338
        %v378 = vunpack.c.l.b16 %v339
        %v379 = vunpack.c.l.b16 %v340
        %v380 = vunpack.c.l.b16 %v341
        %v381 = vpack.c.b16 %v366, %v365
        %v382 = vpack.c.b16 %v368, %v367
        %v383 = vpack.c.b16 %v370, %v369
        %v384 = vpack.c.b16 %v372, %v371
        %v385 = vpack.c.b16 %v374, %v373
        %v386 = vpack.c.b16 %v376, %v375
        %v387 = vpack.c.b16 %v378, %v377
        %v388 = vpack.c.b16 %v380, %v379
        %397 = vmatprep.subr.bf16.mxu0 0
        %398 = vmatpush1.bf16.msra.mxu0 %v388
        %399 = vmatprep.subr.bf16.mxu0 0
        %400 = vmatpush1.bf16.msra.mxu0 %v387
        %401 = vmatprep.subr.bf16.mxu0 0
        %402 = vmatpush1.bf16.msra.mxu0 %v386
        %403 = vmatprep.subr.bf16.mxu0 0
        %404 = vmatpush1.bf16.msra.mxu0 %v385
        %405 = vmatprep.subr.bf16.mxu0 0
        %406 = vmatpush1.bf16.msra.mxu0 %v384
        %407 = vmatprep.subr.bf16.mxu0 0
        %408 = vmatpush1.bf16.msra.mxu0 %v383
        %409 = vmatprep.subr.bf16.mxu0 0
        %410 = vmatpush1.bf16.msra.mxu0 %v382
        %411 = vmatprep.subr.bf16.mxu0 0
        %412 = vmatpush1.bf16.msra.mxu0 %v381
        %413 = vmatprep.subr.bf16.mxu0 0
        %414 = vmatpush2.bf16.msra.mxu0 0
        %415 = vmatprep.subr.bf16.mxu0 0
        %416 = vmatpush2.bf16.msra.mxu0 0
        %417 = vmatprep.subr.bf16.mxu0 0
        %418 = vmatpush2.bf16.msra.mxu0 0
        %419 = vmatprep.subr.bf16.mxu0 0
        %420 = vmatpush2.bf16.msra.mxu0 0
        %421 = vmatprep.subr.bf16.mxu0 0
        %422 = vmatpush2.bf16.msra.mxu0 0
        %423 = vmatprep.subr.bf16.mxu0 0
        %424 = vmatpush2.bf16.msra.mxu0 0
        %425 = vmatprep.subr.bf16.mxu0 0
        %426 = vmatpush2.bf16.msra.mxu0 0
        %427 = vmatprep.subr.bf16.mxu0 0
        %428 = vmatpush2.bf16.msra.mxu0 0
        %429 = vmatprep.mubr.bf16.mxu0 0
        %430 = vmatmul.mubr.bf16.gmra.mxu0 %v325
        %v431 = vpop.f32.mrf.mxu0
        %v432 = vadd.f32 %v347, %v431
        %v433 = vpop.f32.mrf.mxu0
        %v434 = vpop.f32.mrf.mxu0
        %v435 = vpop.f32.mrf.mxu0
        %436 = vdwg.mxu0
        %v437 = vmax.f32 %v432, 0.0
        %v438 = vpack.c.bf16 %v437, %v437
        %v439 = vld [vmem:[#allocation7] sm:$0xf]
        %v440 = vld [vmem:[#allocation7 + $0x4] sm:$0xf]
        %v441 = vld [vmem:[#allocation7 + $0x8] sm:$0xf]
        %v442 = vld [vmem:[#allocation7 + $0xc] sm:$0xf]
        %v443 = vld [vmem:[#allocation7 + $0x10] sm:$0xf]
        %v444 = vld [vmem:[#allocation7 + $0x14] sm:$0xf]
        %v445 = vld [vmem:[#allocation7 + $0x18] sm:$0xf]
        %v446 = vld [vmem:[#allocation7 + $0x1c] sm:$0xf]
        %v447 = vld [vmem:[#allocation7 + $0x20] sm:$0xf]
        %v448 = vld [vmem:[#allocation7 + $0x24] sm:$0xf]
        %v449 = vld [vmem:[#allocation7 + $0x28] sm:$0xf]
        %v450 = vld [vmem:[#allocation7 + $0x2c] sm:$0xf]
        %v451 = vld [vmem:[#allocation7 + $0x30] sm:$0xf]
        %v452 = vld [vmem:[#allocation7 + $0x34] sm:$0xf]
        %v453 = vld [vmem:[#allocation7 + $0x38] sm:$0xf]
        %v454 = vld [vmem:[#allocation7 + $0x3c] sm:$0xf]
        %v455 = vld [vmem:[%s4] sm:$0x1]
        %v457 = vlaneseq
        %v458 = vshrl.u32 %v457, 7
        %v459 = vsub.s32 0, %v458
        %v460 = vrot.slane %v455, %v459
        %v478 = vunpack.c.l.b16 %v439
        %v479 = vunpack.c.l.b16 %v440
        %v480 = vunpack.c.l.b16 %v441
        %v481 = vunpack.c.l.b16 %v442
        %v482 = vunpack.c.l.b16 %v443
        %v483 = vunpack.c.l.b16 %v444
        %v484 = vunpack.c.l.b16 %v445
        %v485 = vunpack.c.l.b16 %v446
        %v486 = vunpack.c.l.b16 %v447
        %v487 = vunpack.c.l.b16 %v448
        %v488 = vunpack.c.l.b16 %v449
        %v489 = vunpack.c.l.b16 %v450
        %v490 = vunpack.c.l.b16 %v451
        %v491 = vunpack.c.l.b16 %v452
        %v492 = vunpack.c.l.b16 %v453
        %v493 = vunpack.c.l.b16 %v454
        %v494 = vpack.c.b16 %v479, %v478
        %v495 = vpack.c.b16 %v481, %v480
        %v496 = vpack.c.b16 %v483, %v482
        %v497 = vpack.c.b16 %v485, %v484
        %v498 = vpack.c.b16 %v487, %v486
        %v499 = vpack.c.b16 %v489, %v488
        %v500 = vpack.c.b16 %v491, %v490
        %v501 = vpack.c.b16 %v493, %v492
        %510 = vmatprep.subr.bf16.mxu0 0
        %511 = vmatpush1.bf16.msra.mxu0 %v501
        %512 = vmatprep.subr.bf16.mxu0 0
        %513 = vmatpush1.bf16.msra.mxu0 %v500
        %514 = vmatprep.subr.bf16.mxu0 0
        %515 = vmatpush1.bf16.msra.mxu0 %v499
        %516 = vmatprep.subr.bf16.mxu0 0
        %517 = vmatpush1.bf16.msra.mxu0 %v498
        %518 = vmatprep.subr.bf16.mxu0 0
        %519 = vmatpush1.bf16.msra.mxu0 %v497
        %520 = vmatprep.subr.bf16.mxu0 0
        %521 = vmatpush1.bf16.msra.mxu0 %v496
        %522 = vmatprep.subr.bf16.mxu0 0
        %523 = vmatpush1.bf16.msra.mxu0 %v495
        %524 = vmatprep.subr.bf16.mxu0 0
        %525 = vmatpush1.bf16.msra.mxu0 %v494
        %526 = vmatprep.subr.bf16.mxu0 0
        %527 = vmatpush2.bf16.msra.mxu0 0
        %528 = vmatprep.subr.bf16.mxu0 0
        %529 = vmatpush2.bf16.msra.mxu0 0
        %530 = vmatprep.subr.bf16.mxu0 0
        %531 = vmatpush2.bf16.msra.mxu0 0
        %532 = vmatprep.subr.bf16.mxu0 0
        %533 = vmatpush2.bf16.msra.mxu0 0
        %534 = vmatprep.subr.bf16.mxu0 0
        %535 = vmatpush2.bf16.msra.mxu0 0
        %536 = vmatprep.subr.bf16.mxu0 0
        %537 = vmatpush2.bf16.msra.mxu0 0
        %538 = vmatprep.subr.bf16.mxu0 0
        %539 = vmatpush2.bf16.msra.mxu0 0
        %540 = vmatprep.subr.bf16.mxu0 0
        %541 = vmatpush2.bf16.msra.mxu0 0
        %542 = vmatprep.mubr.bf16.mxu0 0
        %543 = vmatmul.mubr.bf16.gmra.mxu0 %v438
        %v544 = vpop.f32.mrf.mxu0
        %v545 = vadd.f32 %v460, %v544
        %v546 = vpop.f32.mrf.mxu0
        %v547 = vpop.f32.mrf.mxu0
        %v548 = vpop.f32.mrf.mxu0
        %549 = vdwg.mxu0
        %v550 = vadd.f32 %v545, %v324
        %v551 = vlaneseq
        %v552 = vand.u32 %v551, 127
        %vm553 = vcmp.lt.s32.totalorder %v552, 32
        %554 = vadd.xlane.f32.xlu0 %v550
        %v555 = vpop.xlane.xlu0 %554
        %v556 = vmul.f32 %v555, 0.03125
        %v557 = vsub.f32 %v550, %v556
        %v558 = vsel %vm553, %v557, 0.0
        %v559 = vmul.f32 %v558, %v558
        %560 = vadd.xlane.f32.xlu0 %v559
        %v561 = vpop.xlane.xlu0 %560
        %v562 = vmul.f32 %v561, 0.03125
        %v563 = vadd.f32 %v562, 1e-06
        %v564 = vrsqrt.pop %v563
        %v565 = vmul.f32 %v558, %v564
        %v566 = vld [vmem:[%s5] sm:$0x1]
        %v568 = vlaneseq
        %v569 = vshrl.u32 %v568, 7
        %v570 = vsub.s32 0, %v569
        %v571 = vrot.slane %v566, %v570
        %v573 = vmul.f32 %v565, %v571
        %v574 = vld [vmem:[%s6] sm:$0x1]
        %v576 = vlaneseq
        %v577 = vshrl.u32 %v576, 7
        %v578 = vsub.s32 0, %v577
        %v579 = vrot.slane %v574, %v578
        %v581 = vadd.f32 %v573, %v579
        %582 = vst [vmem:[%s322] sm:$0xff] %v581
        %s583 = sand.u32 %s185, 1
        %s584 = scalar_lea.sflag [#allocation4], %s583
        %s585 = sand.u32 %s185, 1
        %s586 = smul.addr %s585, 8
        %s587 = scalar_lea.vmem [#allocation8], %s586
        // Predicated region
        $region61: #{tpu_custom_call.1} parent=47 // pred_check
          %p588 = pneg %p195
        $region62: #{tpu_custom_call.1} parent=47 // pred_check_branch
          %590 = sbr.rel (%p588) target = $region64
        $region63: #{tpu_custom_call.1} parent=47 // pred_region
          %s592 = ssub.s32 128, 128
          %593 = vsyncadd %s584, %s592
          %s594 = smul.addr %s25, 128
          %s595 = scalar_lea.hbm %s7, %s594
          %s597 = sshll.u32 %s587, 4
          %s598 = int_to_ptr.vmem [resolvable:$true] %s597
          %600 = dma.vmem_to_hbm [thread:$0]  %s598, 128, %s595, %s584
        $region64: #{tpu_custom_call.1} parent=47 // pred_fallthru
          _
      $region48: #{tpu_custom_call.1} parent=5 // pred_fallthru
        _
      %p601 = scmp.le.s32.totalorder 2, %s20
      // Predicated region
      $region65: #{tpu_custom_call.1} parent=5 // pred_check
        %p602 = pneg %p601
      $region66: #{tpu_custom_call.1} parent=5 // pred_check_branch
        %604 = sbr.rel (%p602) target = $region68
      $region67: #{tpu_custom_call.1} parent=5 // pred_region
        %s605 = ssub.s32 %s20, 2
        // Predicated region
        $region69: #{tpu_custom_call.1} parent=67 // pred_check
          %p606 = pneg %p201
        $region70: #{tpu_custom_call.1} parent=67 // pred_check_branch
          %608 = sbr.rel (%p606) target = $region72
        $region71: #{tpu_custom_call.1} parent=67 // pred_region
          %s609 = sand.u32 %s186, 1
          %s610 = scalar_lea.sflag [#allocation4], %s609
          %s611 = sand.u32 %s186, 1
          %s612 = smul.addr %s611, 8
          %s613 = scalar_lea.vmem [#allocation8], %s612
          %614 = dma.done %s610, 128
        $region72: #{tpu_custom_call.1} parent=67 // pred_fallthru
          _
      $region68: #{tpu_custom_call.1} parent=5 // pred_fallthru
        _
    $region6: #{tpu_custom_call.1} parent=1 // loop_footer
      %s24 = sadd.s32 1, %s20
    $region7: #{tpu_custom_call.1} parent=1 // loop_footer_branch
      %19 = sbr.rel target = $region3
    $region8: #{tpu_custom_call.1} parent=1 // loop_exit
      _
    %615 = vsyncpa [#allocation3], 1
    %s616 = scalar_lea.sflag [#allocation3], 1
    %617 = vsyncpa %s616, 1
    %618 = vsyncpa [#allocation6], 1
    %619 = vsyncpa [#allocation4], 1
    %s620 = scalar_lea.sflag [#allocation4], 1
    %621 = vsyncpa %s620, 1

</llo_original>
